<compile_context>
chip_gen: v6e
topology: v6e:2x2x1
jax: 0.10.0
libtpu: 0.0.40
codegen_flags: <defaults>
</compile_context>

<pallas_src>
import jax
import jax.numpy as jnp
from jax.experimental import pallas as pl
from jax.experimental.pallas import tpu as pltpu

LN_EPS = 1e-5  # PyTorch nn.LayerNorm default


def _patch_embed_kernel(x_ref, g1m_ref, wbd_ref, g2m_ref, consts_ref, o_ref):
    """One (R, in_w) packed-token tile -> one (R, out_w) packed-output tile.

    PK tokens are packed per lane row; every parameter is block-diagonal
    packed (kron(I_PK, .)) so the kernel needs no in-kernel relayouts.
    Matmul operands are cast to the parameter dtype (bf16 by default) with
    f32 accumulation; elementwise LN math stays in f32.
    """
    g1m = g1m_ref[...]
    mm_dt = g1m.dtype
    x = x_ref[...].astype(jnp.float32)

    # LayerNorm over each token's P2 voxels: group mean/var via MXU matmuls
    # with g1m = kron(I_PK, full((P2,P2), 1/P2)).
    mu = jnp.dot(x.astype(mm_dt), g1m, preferred_element_type=jnp.float32)
    d = x - mu
    var = jnp.dot((d * d).astype(mm_dt), g1m, preferred_element_type=jnp.float32)
    xn = d * jax.lax.rsqrt(var + LN_EPS)          # LN1 affine folded into W.

    # Linear in the packed layout.  LN2 mean-centering is folded into the
    # weight, so the matmul output is already mean-removed per token.
    d2 = jnp.dot(xn.astype(mm_dt), wbd_ref[...], preferred_element_type=jnp.float32)
    d2 = d2 + consts_ref[0:1, :]                  # centered bias (f32)

    # LayerNorm over hidden dims: only the variance reduction remains.
    var2 = jnp.dot((d2 * d2).astype(mm_dt), g2m_ref[...],
                   preferred_element_type=jnp.float32)
    o = d2 * jax.lax.rsqrt(var2 + LN_EPS) * consts_ref[1:2, :] + consts_ref[2:3, :]
    o_ref[...] = o.astype(o_ref.dtype)


def video_patch_embedding(x, params, patch_size, hidden_size, *,
                          tile_bytes=4 << 20,
                          matmul_dtype=jnp.bfloat16,
                          out_dtype=jnp.float32,
                          pos_emb=None):
    """x: (B, F, 1, H, W) float32.  Returns (B, F*h*w, hidden_size)."""
    g1, b1, w, b, g2, b2 = params
    B, F, C, H, W = x.shape
    assert C == 1, "VideoPatchEmbedding expects a singleton channel dim."
    p = patch_size
    assert H % p == 0 and W % p == 0
    h, wn = H // p, W // p
    P2 = p * p
    HID = hidden_size
    N = F * h * wn
    M = B * N

    # Patchify: 'b f () (h p1) (w p2) -> b (f h w) (p1 p2)'  (plain-JAX glue).
    tokens = x.reshape(B, F, h, p, wn, p).transpose(0, 1, 2, 4, 3, 5)
    flat = tokens.reshape(M, P2).astype(jnp.float32)

    # Fold LN1 affine and LN2 mean-centering into the linear layer:
    #   LN2_center((LN1(x)*g1 + b1) @ W + b)
    #     == LN1(x) @ [(g1[:,None]*W) @ (I - 11^T/H)] + [(b1@W + b) - mean(.)]
    w_f = (g1[:, None] * w).astype(jnp.float32)              # (P2, HID)
    b_f = (b + b1 @ w).astype(jnp.float32)                   # (HID,)
    w_c = w_f - jnp.mean(w_f, axis=1, keepdims=True)         # LN2-centered weight
    b_c = b_f - jnp.mean(b_f)                                # LN2-centered bias

    # Lane-dense packing: PK tokens per 128-lane row.  For HID >= 128 the
    # output is already lane-dense, and packed LN2 matrices would scale as
    # (PK*HID)^2, so packing is disabled (PK=1).
    LANE = 128
    PK = 1
    if HID < LANE and LANE % P2 == 0:
        PK = LANE // P2
        while PK > 1 and (PK * HID > 2 * LANE or M % PK != 0):
            PK //= 2
    in_w = PK * P2
    out_w = PK * HID

    # Packed, pre-folded parameters (built once; tiny vs. the token stream).
    eye = jnp.eye(PK, dtype=jnp.float32)
    wbd = jnp.kron(eye, w_c).astype(matmul_dtype)                          # (in_w, out_w)
    g1m = jnp.kron(eye, jnp.full((P2, P2), 1.0 / P2, jnp.float32)).astype(matmul_dtype)
    g2m = jnp.kron(eye, jnp.full((HID, HID), 1.0 / HID, jnp.float32)).astype(matmul_dtype)
    consts = jnp.stack([jnp.tile(b_c, PK),
                        jnp.tile(g2.astype(jnp.float32), PK),
                        jnp.tile(b2.astype(jnp.float32), PK)])             # (3, out_w) f32

    # Row tiling without a pad copy: packed row count is padded only in the
    # rare case it is not a multiple of 8 sublanes.
    R_total = M // PK
    pad_rows = (-R_total) % 8
    if pad_rows:
        flat = jnp.pad(flat, ((0, pad_rows * PK), (0, 0)))
        R_total += pad_rows
    x_packed = flat.reshape(R_total, in_w)      # row-major identical: free view

    # Target rows per tile from a byte budget (~tile_bytes of in+out per step,
    # i.e. ~2*tile_bytes double-buffered), capped so the grid keeps >= 2 steps
    # whenever possible (v7x megacore).
    target_rows = max(8, (tile_bytes // ((in_w + out_w) * 4)) // 8 * 8)
    if R_total >= 16:
        target_rows = min(target_rows, max(8, (R_total // 2) // 8 * 8))
    q_total = R_total // 8
    q = 1
    for cand in range(min(q_total, target_rows // 8), 0, -1):
        if q_total % cand == 0:
            q = cand
            break
    R_tile = 8 * q
    grid = (R_total // R_tile,)

    # VMEM guard (double-buffered params + tiles).
    param_bytes = (g1m.size + wbd.size + g2m.size) * g1m.dtype.itemsize + consts.size * 4
    vmem_est = 2 * param_bytes + 2 * R_tile * (in_w + out_w) * 4
    assert vmem_est < 40 * 1024 * 1024, (
        f"patch-embed VMEM estimate ~{vmem_est >> 20} MiB exceeds budget; "
        "reduce tile_bytes or hidden_size packing")

    out_packed = pl.pallas_call(
        _patch_embed_kernel,
        out_shape=jax.ShapeDtypeStruct((R_total, out_w), out_dtype),
        grid_spec=pl.GridSpec(
            grid=grid,
            in_specs=[
                pl.BlockSpec((R_tile, in_w), lambda i: (i, 0)),   # packed tokens
                pl.BlockSpec((in_w, in_w), lambda i: (0, 0)),     # LN1 group-mean
                pl.BlockSpec((in_w, out_w), lambda i: (0, 0)),    # centered packed W
                pl.BlockSpec((out_w, out_w), lambda i: (0, 0)),   # LN2 group-mean
                pl.BlockSpec((3, out_w), lambda i: (0, 0)),       # [bias_c; gamma2; beta2]
            ],
            out_specs=pl.BlockSpec((R_tile, out_w), lambda i: (i, 0)),
        ),
        compiler_params=pltpu.CompilerParams(
            dimension_semantics=("parallel",)),
    )(x_packed, g1m, wbd, g2m, consts)

    out = out_packed.reshape(R_total * PK, HID)[:M]
    out = out.reshape(B, N, HID)
    if pos_emb is not None:
        # PositionalEmbedding(addition_type='add') with a caller-built table.
        out = out + pos_emb.astype(out.dtype)
    # TODO(synk): dropout (training only) is left to the caller.
    return out


def _reference(x, params, patch_size, hidden_size):
    """Pure-JAX reference of the PyTorch forward, for verification."""
    g1, b1, w, b, g2, b2 = params
    B, F, C, H, W = x.shape
    p = patch_size
    h, wn = H // p, W // p
    t = x.reshape(B, F, h, p, wn, p).transpose(0, 1, 2, 4, 3, 5)
    t = t.reshape(B, F * h * wn, p * p)

    def ln(v, g, bb):
        mu = jnp.mean(v, axis=-1, keepdims=True)
        var = jnp.mean((v - mu) ** 2, axis=-1, keepdims=True)
        return (v - mu) / jnp.sqrt(var + LN_EPS) * g + bb

    t = ln(t, g1, b1)
    t = t @ w + b
    return ln(t, g2, b2)


if __name__ == "__main__":
    # patch_size given as [1, p, p] => num_voxels = p*p, patch_size = p
    p = 4
    num_voxels = 1 * p * p          # 16
    hidden_size = 32
    B, F, H, W = 2, 2, 16, 16       # tokens per batch = F*(H//p)*(W//p) = 32

    key = jax.random.PRNGKey(0)
    kx, kw, kb, kg1, kb1, kg2, kb2 = jax.random.split(key, 7)
    x = jax.random.normal(kx, (B, F, 1, H, W), dtype=jnp.float32)

    # Non-trivial affine params so the LN1/LN2 folding is actually verified.
    gamma1 = 1.0 + 0.1 * jax.random.normal(kg1, (num_voxels,), jnp.float32)
    beta1 = 0.1 * jax.random.normal(kb1, (num_voxels,), jnp.float32)
    w_lin = jax.random.normal(kw, (num_voxels, hidden_size), jnp.float32) * 0.05
    b_lin = jax.random.normal(kb, (hidden_size,), jnp.float32) * 0.01
    gamma2 = 1.0 + 0.1 * jax.random.normal(kg2, (hidden_size,), jnp.float32)
    beta2 = 0.1 * jax.random.normal(kb2, (hidden_size,), jnp.float32)
    params = (gamma1, beta1, w_lin, b_lin, gamma2, beta2)

    ref = _reference(x, params, p, hidden_size)

    # 1) Default fast path: bf16 MXU operands + f32 accumulation/elementwise.
    #    Tolerance is loosened vs the fp32 reference (bf16 dot operands), as
    #    sanctioned by the perf review.
    out = jax.block_until_ready(video_patch_embedding(x, params, p, hidden_size))
    assert out.shape == (B, F * (H // p) * (W // p), hidden_size)
    assert jnp.allclose(out, ref, atol=3e-2, rtol=3e-2), \
        float(jnp.max(jnp.abs(out - ref)))

    # 2) Strict fp32-matmul path: parity with the PyTorch fp32 math.
    out32 = jax.block_until_ready(
        video_patch_embedding(x, params, p, hidden_size,
                              matmul_dtype=jnp.float32))
    assert jnp.allclose(out32, ref, atol=1e-4, rtol=1e-4), \
        float(jnp.max(jnp.abs(out32 - ref)))

    # 3) Large-hidden guard path (hidden >= 128 -> no output packing, PK=1,
    #    multi-step grid), checked strictly in fp32.
    p3, hid3 = 4, 768
    B3, F3, H3, W3 = 1, 1, 16, 16
    k1, k2, k3, k4, k5, k6, k7 = jax.random.split(jax.random.PRNGKey(1), 7)
    x3 = jax.random.normal(k1, (B3, F3, 1, H3, W3), jnp.float32)
    params3 = (1.0 + 0.1 * jax.random.normal(k2, (p3 * p3,), jnp.float32),
               0.1 * jax.random.normal(k3, (p3 * p3,), jnp.float32),
               0.05 * jax.random.normal(k4, (p3 * p3, hid3), jnp.float32),
               0.01 * jax.random.normal(k5, (hid3,), jnp.float32),
               1.0 + 0.1 * jax.random.normal(k6, (hid3,), jnp.float32),
               0.1 * jax.random.normal(k7, (hid3,), jnp.float32))
    out3 = jax.block_until_ready(
        video_patch_embedding(x3, params3, p3, hid3, matmul_dtype=jnp.float32))
    ref3 = _reference(x3, params3, p3, hid3)
    assert out3.shape == (B3, F3 * (H3 // p3) * (W3 // p3), hid3)
    assert jnp.allclose(out3, ref3, atol=1e-4, rtol=1e-4), \
        float(jnp.max(jnp.abs(out3 - ref3)))

    print("KERNEL_OK")
</pallas_src>

<mosaic_0001>
module attributes {stable_mosaic.version = 11 : i64} {
  func.func @_patch_embed_kernel(%arg0: i32, %arg1: memref<8x128xf32, #tpu.memory_space<vmem>>, %arg2: memref<128x128xbf16, #tpu.memory_space<vmem>>, %arg3: memref<128x256xbf16, #tpu.memory_space<vmem>>, %arg4: memref<256x256xbf16, #tpu.memory_space<vmem>>, %arg5: memref<3x256xf32, #tpu.memory_space<vmem>>, %arg6: memref<8x256xf32, #tpu.memory_space<vmem>>) attributes {dimension_semantics = [#tpu.dimension_semantics<parallel>], iteration_bounds = array<i64: 1>, scalar_prefetch = 0 : i64, scratch_operands = 0 : i64, tpu.core_type = #tpu.core_type<tc>, window_params = [{transform_indices = @transform_0, window_bounds = array<i64: 8, 128>}, {pipeline_mode = #tpu.pipeline_mode<synchronous>, transform_indices = @transform_1, window_bounds = array<i64: 128, 128>}, {pipeline_mode = #tpu.pipeline_mode<synchronous>, transform_indices = @transform_2, window_bounds = array<i64: 128, 256>}, {pipeline_mode = #tpu.pipeline_mode<synchronous>, transform_indices = @transform_3, window_bounds = array<i64: 256, 256>}, {pipeline_mode = #tpu.pipeline_mode<synchronous>, transform_indices = @transform_4, window_bounds = array<i64: 3, 256>}, {transform_indices = @transform_5, window_bounds = array<i64: 8, 256>}]} {
    %c0 = arith.constant 0 : index
    %c0_0 = arith.constant 0 : index
    %0 = vector.load %arg2[%c0, %c0_0] : memref<128x128xbf16, #tpu.memory_space<vmem>>, vector<128x128xbf16>
    %c0_1 = arith.constant 0 : index
    %c0_2 = arith.constant 0 : index
    %1 = vector.load %arg1[%c0_1, %c0_2] : memref<8x128xf32, #tpu.memory_space<vmem>>, vector<8x128xf32>
    %2 = arith.truncf %1 : vector<8x128xf32> to vector<8x128xbf16>
    %cst = arith.constant dense<0.000000e+00> : vector<8x128xf32>
    %3 = tpu.matmul %2, %0, %cst {dimension_numbers = #tpu.dot_dimension_numbers<[1], [0], [0], [1], [0, 0, 1, 1], [], []>} : vector<8x128xbf16>, vector<128x128xbf16>, vector<8x128xf32> -> vector<8x128xf32>
    %4 = arith.subf %1, %3 : vector<8x128xf32>
    %5 = arith.mulf %4, %4 : vector<8x128xf32>
    %6 = arith.truncf %5 : vector<8x128xf32> to vector<8x128xbf16>
    %cst_3 = arith.constant dense<0.000000e+00> : vector<8x128xf32>
    %7 = tpu.matmul %6, %0, %cst_3 {dimension_numbers = #tpu.dot_dimension_numbers<[1], [0], [0], [1], [0, 0, 1, 1], [], []>} : vector<8x128xbf16>, vector<128x128xbf16>, vector<8x128xf32> -> vector<8x128xf32>
    %cst_4 = arith.constant 9.99999974E-6 : f32
    %8 = vector.broadcast %cst_4 : f32 to vector<8x128xf32>
    %9 = arith.addf %7, %8 : vector<8x128xf32>
    %10 = math.rsqrt %9 : vector<8x128xf32>
    %11 = arith.mulf %4, %10 : vector<8x128xf32>
    %12 = arith.truncf %11 : vector<8x128xf32> to vector<8x128xbf16>
    %c0_5 = arith.constant 0 : index
    %c0_6 = arith.constant 0 : index
    %13 = vector.load %arg3[%c0_5, %c0_6] : memref<128x256xbf16, #tpu.memory_space<vmem>>, vector<128x256xbf16>
    %cst_7 = arith.constant dense<0.000000e+00> : vector<8x256xf32>
    %14 = tpu.matmul %12, %13, %cst_7 {dimension_numbers = #tpu.dot_dimension_numbers<[1], [0], [0], [1], [0, 0, 1, 1], [], []>} : vector<8x128xbf16>, vector<128x256xbf16>, vector<8x256xf32> -> vector<8x256xf32>
    %c0_8 = arith.constant 0 : index
    %c0_9 = arith.constant 0 : index
    %15 = vector.load %arg5[%c0_8, %c0_9] : memref<3x256xf32, #tpu.memory_space<vmem>>, vector<1x256xf32>
    %16 = vector.broadcast %15 : vector<1x256xf32> to vector<8x256xf32>
    %17 = arith.addf %14, %16 : vector<8x256xf32>
    %18 = arith.mulf %17, %17 : vector<8x256xf32>
    %19 = arith.truncf %18 : vector<8x256xf32> to vector<8x256xbf16>
    %c0_10 = arith.constant 0 : index
    %c0_11 = arith.constant 0 : index
    %20 = vector.load %arg4[%c0_10, %c0_11] : memref<256x256xbf16, #tpu.memory_space<vmem>>, vector<256x256xbf16>
    %cst_12 = arith.constant dense<0.000000e+00> : vector<8x256xf32>
    %21 = tpu.matmul %19, %20, %cst_12 {dimension_numbers = #tpu.dot_dimension_numbers<[1], [0], [0], [1], [0, 0, 1, 1], [], []>} : vector<8x256xbf16>, vector<256x256xbf16>, vector<8x256xf32> -> vector<8x256xf32>
    %cst_13 = arith.constant 9.99999974E-6 : f32
    %22 = vector.broadcast %cst_13 : f32 to vector<8x256xf32>
    %23 = arith.addf %21, %22 : vector<8x256xf32>
    %24 = math.rsqrt %23 : vector<8x256xf32>
    %25 = arith.mulf %17, %24 : vector<8x256xf32>
    %c1 = arith.constant 1 : index
    %c0_14 = arith.constant 0 : index
    %26 = vector.load %arg5[%c1, %c0_14] : memref<3x256xf32, #tpu.memory_space<vmem>>, vector<1x256xf32>
    %27 = vector.broadcast %26 : vector<1x256xf32> to vector<8x256xf32>
    %28 = arith.mulf %25, %27 : vector<8x256xf32>
    %c2 = arith.constant 2 : index
    %c0_15 = arith.constant 0 : index
    %29 = vector.load %arg5[%c2, %c0_15] : memref<3x256xf32, #tpu.memory_space<vmem>>, vector<1x256xf32>
    %30 = vector.broadcast %29 : vector<1x256xf32> to vector<8x256xf32>
    %31 = arith.addf %28, %30 : vector<8x256xf32>
    %c0_16 = arith.constant 0 : index
    %c0_17 = arith.constant 0 : index
    %32 = vector.load %arg6[%c0_16, %c0_17] : memref<8x256xf32, #tpu.memory_space<vmem>>, vector<8x256xf32>
    tpu.vector_store %arg6[%c0_16, %c0_17], %31 {strides = array<i32>} : memref<8x256xf32, #tpu.memory_space<vmem>>, vector<8x256xf32>,
    return
  }
  func.func @transform_0(%arg0: i32) -> (i32, i32) {
    %c0_i32 = arith.constant 0 : i32
    %c0_i32_0 = arith.constant 0 : i32
    return %arg0, %c0_i32 : i32, i32
  }
  func.func @transform_1(%arg0: i32) -> (i32, i32) {
    %c0_i32 = arith.constant 0 : i32
    %c0_i32_0 = arith.constant 0 : i32
    %c0_i32_1 = arith.constant 0 : i32
    return %c0_i32, %c0_i32_0 : i32, i32
  }
  func.func @transform_2(%arg0: i32) -> (i32, i32) {
    %c0_i32 = arith.constant 0 : i32
    %c0_i32_0 = arith.constant 0 : i32
    %c0_i32_1 = arith.constant 0 : i32
    return %c0_i32, %c0_i32_0 : i32, i32
  }
  func.func @transform_3(%arg0: i32) -> (i32, i32) {
    %c0_i32 = arith.constant 0 : i32
    %c0_i32_0 = arith.constant 0 : i32
    %c0_i32_1 = arith.constant 0 : i32
    return %c0_i32, %c0_i32_0 : i32, i32
  }
  func.func @transform_4(%arg0: i32) -> (i32, i32) {
    %c0_i32 = arith.constant 0 : i32
    %c0_i32_0 = arith.constant 0 : i32
    %c0_i32_1 = arith.constant 0 : i32
    return %c0_i32, %c0_i32_0 : i32, i32
  }
  func.func @transform_5(%arg0: i32) -> (i32, i32) {
    %c0_i32 = arith.constant 0 : i32
    %c0_i32_0 = arith.constant 0 : i32
    return %arg0, %c0_i32 : i32, i32
  }
}

</mosaic_0001>

<llo_original>
// kernel: tpu_custom_call.1
$region0: #{tpu_custom_call.1}
  #allocation0 [shape = 'u32[]', space=smem, size = 0x4, offset = 0x4, fixed_abs, tag = 'smem constant byte address 0x4 - core index']
  #allocation1 [shape = 'u32[144,128]{1,0:T(1,128)}', space=vmem, size = 0x12000, scoped, tag = 'internal scratch']
  %s0 = inlined_call_operand.hbm [shape: f32[8,128], index: 0, kind: input, shape index: {}]
  %s1 = inlined_call_operand.hbm [shape: bf16[128,128], index: 1, kind: input, shape index: {}]
  %s2 = inlined_call_operand.hbm [shape: bf16[128,256], index: 2, kind: input, shape index: {}]
  %s3 = inlined_call_operand.hbm [shape: bf16[256,256], index: 3, kind: input, shape index: {}]
  %s4 = inlined_call_operand.hbm [shape: f32[3,256], index: 4, kind: input, shape index: {}]
  %s5 = inlined_call_operand.hbm [shape: f32[8,256], index: 5, kind: output, shape index: {}]
  %s6 = sld [smem:[#allocation0]]
  $region50: #{tpu_custom_call.1} parent=0
    _
  %s8 = ssub.s32 1, %s6
  %s9 = scalar_select 0, %s8, %s6
  $region1: #{tpu_custom_call.1} parent=0
    #allocation2 [shape = 'u8[4096]{0}', space=vmem, size = 0x1000, scoped, tag = 'input window, operand 0, single buffered']
    #allocation3 [shape = 's32[1]{0}', space=sflag, size = 0x4, scoped, tag = 'scoped memory for tpu_custom_call.1']
    #allocation4 [shape = 's32[1]{0}', space=sflag, size = 0x4, scoped, tag = 'scoped memory for tpu_custom_call.1']
    #allocation5 [shape = 'u8[32768]{0}', space=vmem, size = 0x8000, scoped, tag = 'input window, operand 1, single buffered']
    #allocation6 [shape = 's32[1]{0}', space=sflag, size = 0x4, scoped, tag = 'scoped memory for tpu_custom_call.1']
    #allocation7 [shape = 'u8[65536]{0}', space=vmem, size = 0x10000, scoped, tag = 'input window, operand 2, single buffered']
    #allocation8 [shape = 'u8[131072]{0}', space=vmem, size = 0x20000, scoped, tag = 'input window, operand 3, single buffered']
    #allocation9 [shape = 's32[1]{0}', space=sflag, size = 0x4, scoped, tag = 'scoped memory for tpu_custom_call.1']
    #allocation10 [shape = 'u8[4096]{0}', space=vmem, size = 0x1000, scoped, tag = 'input window, operand 4, single buffered']
    #allocation11 [shape = 'u8[8192]{0}', space=vmem, size = 0x2000, scoped, tag = 'output window, operand 0, single buffered']
    %10 = vsyncpa [#allocation3], 0
    %11 = vsyncpa [#allocation6], 0
    %12 = vsyncpa [#allocation9], 0
    %13 = vsyncpa [#allocation4], 0
    // Predicated region
    $region2: #{tpu_custom_call.1} parent=1 // pred_check
      _
    $region3: #{tpu_custom_call.1} parent=1 // pred_check_branch
      %15 = sbr.rel (0) target = $region5
    $region4: #{tpu_custom_call.1} parent=1 // pred_region
      %s17 = ssub.s32 128, 128
      %18 = vsyncadd [#allocation3], %s17
      %s20 = sshll.u32 [#allocation2], 4
      %s21 = int_to_ptr.vmem [resolvable:$true] %s20
      %23 = dma.hbm_to_vmem [thread:$0]  %s0, 128, %s21, [#allocation3]
    $region5: #{tpu_custom_call.1} parent=1 // pred_fallthru
      _
    // Predicated region
    $region6: #{tpu_custom_call.1} parent=1 // pred_check
      _
    $region7: #{tpu_custom_call.1} parent=1 // pred_check_branch
      %25 = sbr.rel (0) target = $region9
    $region8: #{tpu_custom_call.1} parent=1 // pred_region
      %s27 = ssub.s32 1024, 1024
      %28 = vsyncadd [#allocation6], %s27
      %s29 = sshll.u32 [#allocation5], 4
      %s30 = int_to_ptr.vmem [resolvable:$true] %s29
      %35 = dma.hbm_to_vmem [thread:$0]  %s1, 1024, %s30, [#allocation6], 64, 64, 4
    $region9: #{tpu_custom_call.1} parent=1 // pred_fallthru
      _
    // Predicated region
    $region10: #{tpu_custom_call.1} parent=1 // pred_check
      _
    $region11: #{tpu_custom_call.1} parent=1 // pred_check_branch
      %37 = sbr.rel (0) target = $region13
    $region12: #{tpu_custom_call.1} parent=1 // pred_region
      %s39 = ssub.s32 2048, 2048
      %40 = vsyncadd [#allocation6], %s39
      %s41 = sshll.u32 [#allocation7], 4
      %s42 = int_to_ptr.vmem [resolvable:$true] %s41
      %47 = dma.hbm_to_vmem [thread:$0]  %s2, 2048, %s42, [#allocation6], 128, 128, 8
    $region13: #{tpu_custom_call.1} parent=1 // pred_fallthru
      _
    // Predicated region
    $region14: #{tpu_custom_call.1} parent=1 // pred_check
      _
    $region15: #{tpu_custom_call.1} parent=1 // pred_check_branch
      %49 = sbr.rel (0) target = $region17
    $region16: #{tpu_custom_call.1} parent=1 // pred_region
      %s51 = ssub.s32 4096, 4096
      %52 = vsyncadd [#allocation9], %s51
      %s53 = sshll.u32 [#allocation8], 4
      %s54 = int_to_ptr.vmem [resolvable:$true] %s53
      %59 = dma.hbm_to_vmem [thread:$0]  %s3, 4096, %s54, [#allocation9], 128, 128, 8
    $region17: #{tpu_custom_call.1} parent=1 // pred_fallthru
      _
    // Predicated region
    $region18: #{tpu_custom_call.1} parent=1 // pred_check
      _
    $region19: #{tpu_custom_call.1} parent=1 // pred_check_branch
      %61 = sbr.rel (0) target = $region21
    $region20: #{tpu_custom_call.1} parent=1 // pred_region
      %s63 = ssub.s32 128, 128
      %64 = vsyncadd [#allocation9], %s63
      %s66 = sshll.u32 [#allocation10], 4
      %s67 = int_to_ptr.vmem [resolvable:$true] %s66
      %69 = dma.hbm_to_vmem [thread:$0]  %s4, 128, %s67, [#allocation9]
    $region21: #{tpu_custom_call.1} parent=1 // pred_fallthru
      _
    // Predicated region
    $region22: #{tpu_custom_call.1} parent=1 // pred_check
      _
    $region23: #{tpu_custom_call.1} parent=1 // pred_check_branch
      %71 = sbr.rel (0) target = $region25
    $region24: #{tpu_custom_call.1} parent=1 // pred_region
      %72 = dma.done [#allocation3], 128
    $region25: #{tpu_custom_call.1} parent=1 // pred_fallthru
      _
    // Predicated region
    $region26: #{tpu_custom_call.1} parent=1 // pred_check
      _
    $region27: #{tpu_custom_call.1} parent=1 // pred_check_branch
      %74 = sbr.rel (0) target = $region29
    $region28: #{tpu_custom_call.1} parent=1 // pred_region
      %75 = dma.done [#allocation6], 1024
    $region29: #{tpu_custom_call.1} parent=1 // pred_fallthru
      _
    // Predicated region
    $region30: #{tpu_custom_call.1} parent=1 // pred_check
      _
    $region31: #{tpu_custom_call.1} parent=1 // pred_check_branch
      %77 = sbr.rel (0) target = $region33
    $region32: #{tpu_custom_call.1} parent=1 // pred_region
      %78 = dma.done [#allocation6], 2048
    $region33: #{tpu_custom_call.1} parent=1 // pred_fallthru
      _
    // Predicated region
    $region34: #{tpu_custom_call.1} parent=1 // pred_check
      _
    $region35: #{tpu_custom_call.1} parent=1 // pred_check_branch
      %80 = sbr.rel (0) target = $region37
    $region36: #{tpu_custom_call.1} parent=1 // pred_region
      %81 = dma.done [#allocation9], 4096
    $region37: #{tpu_custom_call.1} parent=1 // pred_fallthru
      _
    // Predicated region
    $region38: #{tpu_custom_call.1} parent=1 // pred_check
      _
    $region39: #{tpu_custom_call.1} parent=1 // pred_check_branch
      %83 = sbr.rel (0) target = $region41
    $region40: #{tpu_custom_call.1} parent=1 // pred_region
      %84 = dma.done [#allocation9], 128
    $region41: #{tpu_custom_call.1} parent=1 // pred_fallthru
      _
    %v86 = vld [vmem:[#allocation5] sm:$0xf]
    %v87 = vld [vmem:[#allocation5 + $0x4] sm:$0xf]
    %v88 = vld [vmem:[#allocation5 + $0x8] sm:$0xf]
    %v89 = vld [vmem:[#allocation5 + $0xc] sm:$0xf]
    %v90 = vld [vmem:[#allocation5 + $0x10] sm:$0xf]
    %v91 = vld [vmem:[#allocation5 + $0x14] sm:$0xf]
    %v92 = vld [vmem:[#allocation5 + $0x18] sm:$0xf]
    %v93 = vld [vmem:[#allocation5 + $0x1c] sm:$0xf]
    %v94 = vld [vmem:[#allocation5 + $0x20] sm:$0xf]
    %v95 = vld [vmem:[#allocation5 + $0x24] sm:$0xf]
    %v96 = vld [vmem:[#allocation5 + $0x28] sm:$0xf]
    %v97 = vld [vmem:[#allocation5 + $0x2c] sm:$0xf]
    %v98 = vld [vmem:[#allocation5 + $0x30] sm:$0xf]
    %v99 = vld [vmem:[#allocation5 + $0x34] sm:$0xf]
    %v100 = vld [vmem:[#allocation5 + $0x38] sm:$0xf]
    %v101 = vld [vmem:[#allocation5 + $0x3c] sm:$0xf]
    %v102 = vld [vmem:[#allocation2] sm:$0xff]
    %v103 = vpack.c.bf16 %v102, %v102
    %v120 = vunpack.c.l.b16 %v86
    %v121 = vunpack.c.l.b16 %v87
    %v122 = vunpack.c.l.b16 %v88
    %v123 = vunpack.c.l.b16 %v89
    %v124 = vunpack.c.l.b16 %v90
    %v125 = vunpack.c.l.b16 %v91
    %v126 = vunpack.c.l.b16 %v92
    %v127 = vunpack.c.l.b16 %v93
    %v128 = vunpack.c.l.b16 %v94
    %v129 = vunpack.c.l.b16 %v95
    %v130 = vunpack.c.l.b16 %v96
    %v131 = vunpack.c.l.b16 %v97
    %v132 = vunpack.c.l.b16 %v98
    %v133 = vunpack.c.l.b16 %v99
    %v134 = vunpack.c.l.b16 %v100
    %v135 = vunpack.c.l.b16 %v101
    %v136 = vpack.c.b16 %v121, %v120
    %v137 = vpack.c.b16 %v123, %v122
    %v138 = vpack.c.b16 %v125, %v124
    %v139 = vpack.c.b16 %v127, %v126
    %v140 = vpack.c.b16 %v129, %v128
    %v141 = vpack.c.b16 %v131, %v130
    %v142 = vpack.c.b16 %v133, %v132
    %v143 = vpack.c.b16 %v135, %v134
    %152 = vmatprep.subr.bf16.mxu0 0
    %153 = vmatpush1.bf16.msra.mxu0 %v143
    %154 = vmatprep.subr.bf16.mxu0 0
    %155 = vmatpush1.bf16.msra.mxu0 %v142
    %156 = vmatprep.subr.bf16.mxu0 0
    %157 = vmatpush1.bf16.msra.mxu0 %v141
    %158 = vmatprep.subr.bf16.mxu0 0
    %159 = vmatpush1.bf16.msra.mxu0 %v140
    %160 = vmatprep.subr.bf16.mxu0 0
    %161 = vmatpush1.bf16.msra.mxu0 %v139
    %162 = vmatprep.subr.bf16.mxu0 0
    %163 = vmatpush1.bf16.msra.mxu0 %v138
    %164 = vmatprep.subr.bf16.mxu0 0
    %165 = vmatpush1.bf16.msra.mxu0 %v137
    %166 = vmatprep.subr.bf16.mxu0 0
    %167 = vmatpush1.bf16.msra.mxu0 %v136
    %168 = vmatprep.subr.bf16.mxu0 0
    %169 = vmatpush2.bf16.msra.mxu0 0
    %170 = vmatprep.subr.bf16.mxu0 0
    %171 = vmatpush2.bf16.msra.mxu0 0
    %172 = vmatprep.subr.bf16.mxu0 0
    %173 = vmatpush2.bf16.msra.mxu0 0
    %174 = vmatprep.subr.bf16.mxu0 0
    %175 = vmatpush2.bf16.msra.mxu0 0
    %176 = vmatprep.subr.bf16.mxu0 0
    %177 = vmatpush2.bf16.msra.mxu0 0
    %178 = vmatprep.subr.bf16.mxu0 0
    %179 = vmatpush2.bf16.msra.mxu0 0
    %180 = vmatprep.subr.bf16.mxu0 0
    %181 = vmatpush2.bf16.msra.mxu0 0
    %182 = vmatprep.subr.bf16.mxu0 0
    %183 = vmatpush2.bf16.msra.mxu0 0
    %184 = vmatprep.mubr.bf16.mxu0 0
    %185 = vmatmul.mubr.bf16.gmra.mxu0 %v103
    %v186 = vpop.f32.mrf.mxu0
    %v187 = vadd.f32 0.0, %v186
    %v188 = vpop.f32.mrf.mxu0
    %v189 = vpop.f32.mrf.mxu0
    %v190 = vpop.f32.mrf.mxu0
    %191 = vdwg.mxu0
    %v192 = vsub.f32 %v102, %v187
    %v193 = vmul.f32 %v192, %v192
    %v194 = vpack.c.bf16 %v193, %v193
    %195 = vmatprep.subr.bf16.mxu0 0
    %196 = vmatpush1.bf16.msra.mxu0 %v143
    %197 = vmatprep.subr.bf16.mxu0 0
    %198 = vmatpush1.bf16.msra.mxu0 %v142
    %199 = vmatprep.subr.bf16.mxu0 0
    %200 = vmatpush1.bf16.msra.mxu0 %v141
    %201 = vmatprep.subr.bf16.mxu0 0
    %202 = vmatpush1.bf16.msra.mxu0 %v140
    %203 = vmatprep.subr.bf16.mxu0 0
    %204 = vmatpush1.bf16.msra.mxu0 %v139
    %205 = vmatprep.subr.bf16.mxu0 0
    %206 = vmatpush1.bf16.msra.mxu0 %v138
    %207 = vmatprep.subr.bf16.mxu0 0
    %208 = vmatpush1.bf16.msra.mxu0 %v137
    %209 = vmatprep.subr.bf16.mxu0 0
    %210 = vmatpush1.bf16.msra.mxu0 %v136
    %211 = vmatprep.subr.bf16.mxu0 0
    %212 = vmatpush2.bf16.msra.mxu0 0
    %213 = vmatprep.subr.bf16.mxu0 0
    %214 = vmatpush2.bf16.msra.mxu0 0
    %215 = vmatprep.subr.bf16.mxu0 0
    %216 = vmatpush2.bf16.msra.mxu0 0
    %217 = vmatprep.subr.bf16.mxu0 0
    %218 = vmatpush2.bf16.msra.mxu0 0
    %219 = vmatprep.subr.bf16.mxu0 0
    %220 = vmatpush2.bf16.msra.mxu0 0
    %221 = vmatprep.subr.bf16.mxu0 0
    %222 = vmatpush2.bf16.msra.mxu0 0
    %223 = vmatprep.subr.bf16.mxu0 0
    %224 = vmatpush2.bf16.msra.mxu0 0
    %225 = vmatprep.subr.bf16.mxu0 0
    %226 = vmatpush2.bf16.msra.mxu0 0
    %227 = vmatprep.mubr.bf16.mxu0 0
    %228 = vmatmul.mubr.bf16.gmra.mxu0 %v194
    %v229 = vpop.f32.mrf.mxu0
    %v230 = vadd.f32 1e-05, %v229
    %v231 = vpop.f32.mrf.mxu0
    %v232 = vpop.f32.mrf.mxu0
    %v233 = vpop.f32.mrf.mxu0
    %234 = vdwg.mxu0
    %v235 = vrsqrt.pop %v230
    %v236 = vmul.f32 %v192, %v235
    %v237 = vpack.c.bf16 %v236, %v236
    %v238 = vld [vmem:[#allocation7] sm:$0xff]
    %v239 = vld [vmem:[#allocation7 + $0x8] sm:$0xff]
    %v240 = vld [vmem:[#allocation7 + $0x10] sm:$0xff]
    %v241 = vld [vmem:[#allocation7 + $0x18] sm:$0xff]
    %v242 = vld [vmem:[#allocation7 + $0x20] sm:$0xff]
    %v243 = vld [vmem:[#allocation7 + $0x28] sm:$0xff]
    %v244 = vld [vmem:[#allocation7 + $0x30] sm:$0xff]
    %v245 = vld [vmem:[#allocation7 + $0x38] sm:$0xff]
    %v246 = vld [vmem:[#allocation7 + $0x40] sm:$0xff]
    %v247 = vld [vmem:[#allocation7 + $0x48] sm:$0xff]
    %v248 = vld [vmem:[#allocation7 + $0x50] sm:$0xff]
    %v249 = vld [vmem:[#allocation7 + $0x58] sm:$0xff]
    %v250 = vld [vmem:[#allocation7 + $0x60] sm:$0xff]
    %v251 = vld [vmem:[#allocation7 + $0x68] sm:$0xff]
    %v252 = vld [vmem:[#allocation7 + $0x70] sm:$0xff]
    %v253 = vld [vmem:[#allocation7 + $0x78] sm:$0xff]
    %v254 = vld [vmem:[#allocation10] ss:$4 sm:$0x3]
    %v256 = vlaneseq
    %v257 = vshrl.u32 %v256, 7
    %v258 = vsub.s32 0, %v257
    %v259 = vrot.slane %v254, %v258
    %v260 = vlaneseq
    %v261 = vshrl.u32 %v260, 7
    %v262 = vsub.s32 1, %v261
    %v263 = vrot.slane %v254, %v262
    %v282 = vunpack.c.l.b16 %v238
    %v283 = vunpack.c.h.b16 %v238
    %v284 = vunpack.c.l.b16 %v239
    %v285 = vunpack.c.h.b16 %v239
    %v286 = vunpack.c.l.b16 %v240
    %v287 = vunpack.c.h.b16 %v240
    %v288 = vunpack.c.l.b16 %v241
    %v289 = vunpack.c.h.b16 %v241
    %v290 = vunpack.c.l.b16 %v242
    %v291 = vunpack.c.h.b16 %v242
    %v292 = vunpack.c.l.b16 %v243
    %v293 = vunpack.c.h.b16 %v243
    %v294 = vunpack.c.l.b16 %v244
    %v295 = vunpack.c.h.b16 %v244
    %v296 = vunpack.c.l.b16 %v245
    %v297 = vunpack.c.h.b16 %v245
    %v298 = vunpack.c.l.b16 %v246
    %v299 = vunpack.c.h.b16 %v246
    %v300 = vunpack.c.l.b16 %v247
    %v301 = vunpack.c.h.b16 %v247
    %v302 = vunpack.c.l.b16 %v248
    %v303 = vunpack.c.h.b16 %v248
    %v304 = vunpack.c.l.b16 %v249
    %v305 = vunpack.c.h.b16 %v249
    %v306 = vunpack.c.l.b16 %v250
    %v307 = vunpack.c.h.b16 %v250
    %v308 = vunpack.c.l.b16 %v251
    %v309 = vunpack.c.h.b16 %v251
    %v310 = vunpack.c.l.b16 %v252
    %v311 = vunpack.c.h.b16 %v252
    %v312 = vunpack.c.l.b16 %v253
    %v313 = vunpack.c.h.b16 %v253
    %v314 = vpack.c.b16 %v284, %v282
    %v315 = vpack.c.b16 %v285, %v283
    %v316 = vpack.c.b16 %v288, %v286
    %v317 = vpack.c.b16 %v289, %v287
    %v318 = vpack.c.b16 %v292, %v290
    %v319 = vpack.c.b16 %v293, %v291
    %v320 = vpack.c.b16 %v296, %v294
    %v321 = vpack.c.b16 %v297, %v295
    %v322 = vpack.c.b16 %v300, %v298
    %v323 = vpack.c.b16 %v301, %v299
    %v324 = vpack.c.b16 %v304, %v302
    %v325 = vpack.c.b16 %v305, %v303
    %v326 = vpack.c.b16 %v308, %v306
    %v327 = vpack.c.b16 %v309, %v307
    %v328 = vpack.c.b16 %v312, %v310
    %v329 = vpack.c.b16 %v313, %v311
    %346 = vmatprep.subr.bf16.mxu0 %v329
    %347 = vmatpush1.bf16.msra.mxu0 %v328
    %348 = vmatprep.subr.bf16.mxu0 %v327
    %349 = vmatpush1.bf16.msra.mxu0 %v326
    %350 = vmatprep.subr.bf16.mxu0 %v325
    %351 = vmatpush1.bf16.msra.mxu0 %v324
    %352 = vmatprep.subr.bf16.mxu0 %v323
    %353 = vmatpush1.bf16.msra.mxu0 %v322
    %354 = vmatprep.subr.bf16.mxu0 %v321
    %355 = vmatpush1.bf16.msra.mxu0 %v320
    %356 = vmatprep.subr.bf16.mxu0 %v319
    %357 = vmatpush1.bf16.msra.mxu0 %v318
    %358 = vmatprep.subr.bf16.mxu0 %v317
    %359 = vmatpush1.bf16.msra.mxu0 %v316
    %360 = vmatprep.subr.bf16.mxu0 %v315
    %361 = vmatpush1.bf16.msra.mxu0 %v314
    %362 = vmatprep.subr.bf16.mxu0 0
    %363 = vmatpush2.bf16.msra.mxu0 0
    %364 = vmatprep.subr.bf16.mxu0 0
    %365 = vmatpush2.bf16.msra.mxu0 0
    %366 = vmatprep.subr.bf16.mxu0 0
    %367 = vmatpush2.bf16.msra.mxu0 0
    %368 = vmatprep.subr.bf16.mxu0 0
    %369 = vmatpush2.bf16.msra.mxu0 0
    %370 = vmatprep.subr.bf16.mxu0 0
    %371 = vmatpush2.bf16.msra.mxu0 0
    %372 = vmatprep.subr.bf16.mxu0 0
    %373 = vmatpush2.bf16.msra.mxu0 0
    %374 = vmatprep.subr.bf16.mxu0 0
    %375 = vmatpush2.bf16.msra.mxu0 0
    %376 = vmatprep.subr.bf16.mxu0 0
    %377 = vmatpush2.bf16.msra.mxu0 0
    %378 = vmatprep.mubr.bf16.mxu0 0
    %379 = vmatmul.mubr.bf16.gmra.mxu0 %v237
    %v380 = vpop.f32.mrf.mxu0
    %v381 = vadd.f32 %v259, %v380
    %v382 = vpop.f32.mrf.mxu0
    %v383 = vadd.f32 %v263, %v382
    %v384 = vpop.f32.mrf.mxu0
    %v385 = vpop.f32.mrf.mxu0
    %386 = vdwg.mxu0
    %v387 = vmul.f32 %v381, %v381
    %v388 = vmul.f32 %v383, %v383
    %v389 = vpack.c.bf16 %v387, %v387
    %v390 = vpack.c.bf16 %v388, %v388
    %v391 = vld [vmem:[#allocation8] sm:$0xff]
    %v392 = vld [vmem:[#allocation8 + $0x8] sm:$0xff]
    %v393 = vld [vmem:[#allocation8 + $0x10] sm:$0xff]
    %v394 = vld [vmem:[#allocation8 + $0x18] sm:$0xff]
    %v395 = vld [vmem:[#allocation8 + $0x20] sm:$0xff]
    %v396 = vld [vmem:[#allocation8 + $0x28] sm:$0xff]
    %v397 = vld [vmem:[#allocation8 + $0x30] sm:$0xff]
    %v398 = vld [vmem:[#allocation8 + $0x38] sm:$0xff]
    %v399 = vld [vmem:[#allocation8 + $0x40] sm:$0xff]
    %v400 = vld [vmem:[#allocation8 + $0x48] sm:$0xff]
    %v401 = vld [vmem:[#allocation8 + $0x50] sm:$0xff]
    %v402 = vld [vmem:[#allocation8 + $0x58] sm:$0xff]
    %v403 = vld [vmem:[#allocation8 + $0x60] sm:$0xff]
    %v404 = vld [vmem:[#allocation8 + $0x68] sm:$0xff]
    %v405 = vld [vmem:[#allocation8 + $0x70] sm:$0xff]
    %v406 = vld [vmem:[#allocation8 + $0x78] sm:$0xff]
    %v407 = vld [vmem:[#allocation8 + $0x80] sm:$0xff]
    %v408 = vld [vmem:[#allocation8 + $0x88] sm:$0xff]
    %v409 = vld [vmem:[#allocation8 + $0x90] sm:$0xff]
    %v410 = vld [vmem:[#allocation8 + $0x98] sm:$0xff]
    %v411 = vld [vmem:[#allocation8 + $0xa0] sm:$0xff]
    %v412 = vld [vmem:[#allocation8 + $0xa8] sm:$0xff]
    %v413 = vld [vmem:[#allocation8 + $0xb0] sm:$0xff]
    %v414 = vld [vmem:[#allocation8 + $0xb8] sm:$0xff]
    %v415 = vld [vmem:[#allocation8 + $0xc0] sm:$0xff]
    %v416 = vld [vmem:[#allocation8 + $0xc8] sm:$0xff]
    %v417 = vld [vmem:[#allocation8 + $0xd0] sm:$0xff]
    %v418 = vld [vmem:[#allocation8 + $0xd8] sm:$0xff]
    %v419 = vld [vmem:[#allocation8 + $0xe0] sm:$0xff]
    %v420 = vld [vmem:[#allocation8 + $0xe8] sm:$0xff]
    %v421 = vld [vmem:[#allocation8 + $0xf0] sm:$0xff]
    %v422 = vld [vmem:[#allocation8 + $0xf8] sm:$0xff]
    %v455 = vunpack.c.l.b16 %v391
    %v456 = vunpack.c.h.b16 %v391
    %v457 = vunpack.c.l.b16 %v392
    %v458 = vunpack.c.h.b16 %v392
    %v459 = vunpack.c.l.b16 %v393
    %v460 = vunpack.c.h.b16 %v393
    %v461 = vunpack.c.l.b16 %v394
    %v462 = vunpack.c.h.b16 %v394
    %v463 = vunpack.c.l.b16 %v395
    %v464 = vunpack.c.h.b16 %v395
    %v465 = vunpack.c.l.b16 %v396
    %v466 = vunpack.c.h.b16 %v396
    %v467 = vunpack.c.l.b16 %v397
    %v468 = vunpack.c.h.b16 %v397
    %v469 = vunpack.c.l.b16 %v398
    %v470 = vunpack.c.h.b16 %v398
    %v471 = vunpack.c.l.b16 %v399
    %v472 = vunpack.c.h.b16 %v399
    %v473 = vunpack.c.l.b16 %v400
    %v474 = vunpack.c.h.b16 %v400
    %v475 = vunpack.c.l.b16 %v401
    %v476 = vunpack.c.h.b16 %v401
    %v477 = vunpack.c.l.b16 %v402
    %v478 = vunpack.c.h.b16 %v402
    %v479 = vunpack.c.l.b16 %v403
    %v480 = vunpack.c.h.b16 %v403
    %v481 = vunpack.c.l.b16 %v404
    %v482 = vunpack.c.h.b16 %v404
    %v483 = vunpack.c.l.b16 %v405
    %v484 = vunpack.c.h.b16 %v405
    %v485 = vunpack.c.l.b16 %v406
    %v486 = vunpack.c.h.b16 %v406
    %v487 = vunpack.c.l.b16 %v407
    %v488 = vunpack.c.h.b16 %v407
    %v489 = vunpack.c.l.b16 %v408
    %v490 = vunpack.c.h.b16 %v408
    %v491 = vunpack.c.l.b16 %v409
    %v492 = vunpack.c.h.b16 %v409
    %v493 = vunpack.c.l.b16 %v410
    %v494 = vunpack.c.h.b16 %v410
    %v495 = vunpack.c.l.b16 %v411
    %v496 = vunpack.c.h.b16 %v411
    %v497 = vunpack.c.l.b16 %v412
    %v498 = vunpack.c.h.b16 %v412
    %v499 = vunpack.c.l.b16 %v413
    %v500 = vunpack.c.h.b16 %v413
    %v501 = vunpack.c.l.b16 %v414
    %v502 = vunpack.c.h.b16 %v414
    %v503 = vunpack.c.l.b16 %v415
    %v504 = vunpack.c.h.b16 %v415
    %v505 = vunpack.c.l.b16 %v416
    %v506 = vunpack.c.h.b16 %v416
    %v507 = vunpack.c.l.b16 %v417
    %v508 = vunpack.c.h.b16 %v417
    %v509 = vunpack.c.l.b16 %v418
    %v510 = vunpack.c.h.b16 %v418
    %v511 = vunpack.c.l.b16 %v419
    %v512 = vunpack.c.h.b16 %v419
    %v513 = vunpack.c.l.b16 %v420
    %v514 = vunpack.c.h.b16 %v420
    %v515 = vunpack.c.l.b16 %v421
    %v516 = vunpack.c.h.b16 %v421
    %v517 = vunpack.c.l.b16 %v422
    %v518 = vunpack.c.h.b16 %v422
    %v519 = vpack.c.b16 %v457, %v455
    %v520 = vpack.c.b16 %v458, %v456
    %v521 = vpack.c.b16 %v461, %v459
    %v522 = vpack.c.b16 %v462, %v460
    %v523 = vpack.c.b16 %v465, %v463
    %v524 = vpack.c.b16 %v466, %v464
    %v525 = vpack.c.b16 %v469, %v467
    %v526 = vpack.c.b16 %v470, %v468
    %v527 = vpack.c.b16 %v473, %v471
    %v528 = vpack.c.b16 %v474, %v472
    %v529 = vpack.c.b16 %v477, %v475
    %v530 = vpack.c.b16 %v478, %v476
    %v531 = vpack.c.b16 %v481, %v479
    %v532 = vpack.c.b16 %v482, %v480
    %v533 = vpack.c.b16 %v485, %v483
    %v534 = vpack.c.b16 %v486, %v484
    %v535 = vpack.c.b16 %v489, %v487
    %v536 = vpack.c.b16 %v490, %v488
    %v537 = vpack.c.b16 %v493, %v491
    %v538 = vpack.c.b16 %v494, %v492
    %v539 = vpack.c.b16 %v497, %v495
    %v540 = vpack.c.b16 %v498, %v496
    %v541 = vpack.c.b16 %v501, %v499
    %v542 = vpack.c.b16 %v502, %v500
    %v543 = vpack.c.b16 %v505, %v503
    %v544 = vpack.c.b16 %v506, %v504
    %v545 = vpack.c.b16 %v509, %v507
    %v546 = vpack.c.b16 %v510, %v508
    %v547 = vpack.c.b16 %v513, %v511
    %v548 = vpack.c.b16 %v514, %v512
    %v549 = vpack.c.b16 %v517, %v515
    %v550 = vpack.c.b16 %v518, %v516
    %583 = vmatprep.subr.bf16.mxu0 %v534
    %584 = vmatpush1.bf16.msra.mxu0 %v533
    %585 = vmatprep.subr.bf16.mxu0 %v532
    %586 = vmatpush1.bf16.msra.mxu0 %v531
    %587 = vmatprep.subr.bf16.mxu0 %v530
    %588 = vmatpush1.bf16.msra.mxu0 %v529
    %589 = vmatprep.subr.bf16.mxu0 %v528
    %590 = vmatpush1.bf16.msra.mxu0 %v527
    %591 = vmatprep.subr.bf16.mxu0 %v526
    %592 = vmatpush1.bf16.msra.mxu0 %v525
    %593 = vmatprep.subr.bf16.mxu0 %v524
    %594 = vmatpush1.bf16.msra.mxu0 %v523
    %595 = vmatprep.subr.bf16.mxu0 %v522
    %596 = vmatpush1.bf16.msra.mxu0 %v521
    %597 = vmatprep.subr.bf16.mxu0 %v520
    %598 = vmatpush1.bf16.msra.mxu0 %v519
    %599 = vmatprep.subr.bf16.mxu0 %v550
    %600 = vmatpush2.bf16.msra.mxu0 %v549
    %601 = vmatprep.subr.bf16.mxu0 %v548
    %602 = vmatpush2.bf16.msra.mxu0 %v547
    %603 = vmatprep.subr.bf16.mxu0 %v546
    %604 = vmatpush2.bf16.msra.mxu0 %v545
    %605 = vmatprep.subr.bf16.mxu0 %v544
    %606 = vmatpush2.bf16.msra.mxu0 %v543
    %607 = vmatprep.subr.bf16.mxu0 %v542
    %608 = vmatpush2.bf16.msra.mxu0 %v541
    %609 = vmatprep.subr.bf16.mxu0 %v540
    %610 = vmatpush2.bf16.msra.mxu0 %v539
    %611 = vmatprep.subr.bf16.mxu0 %v538
    %612 = vmatpush2.bf16.msra.mxu0 %v537
    %613 = vmatprep.subr.bf16.mxu0 %v536
    %614 = vmatpush2.bf16.msra.mxu0 %v535
    %615 = vmatprep.mubr.bf16.mxu0 %v390
    %616 = vmatmul.mubr.bf16.gmra.mxu0 %v389
    %v617 = vpop.f32.mrf.mxu0
    %v618 = vadd.f32 1e-05, %v617
    %v619 = vpop.f32.mrf.mxu0
    %v620 = vadd.f32 1e-05, %v619
    %v621 = vpop.f32.mrf.mxu0
    %v622 = vpop.f32.mrf.mxu0
    %623 = vdwg.mxu0
    %v624 = vrsqrt.pop %v618
    %v625 = vrsqrt.pop %v620
    %v626 = vmul.f32 %v381, %v624
    %v627 = vmul.f32 %v383, %v625
    %s628 = scalar_lea.vmem [#allocation10], 1
    %v629 = vld [vmem:[%s628] ss:$4 sm:$0x3]
    %v631 = vlaneseq
    %v632 = vshrl.u32 %v631, 7
    %v633 = vsub.s32 0, %v632
    %v634 = vrot.slane %v629, %v633
    %v635 = vlaneseq
    %v636 = vshrl.u32 %v635, 7
    %v637 = vsub.s32 1, %v636
    %v638 = vrot.slane %v629, %v637
    %v641 = vmul.f32 %v626, %v634
    %v642 = vmul.f32 %v627, %v638
    %s643 = scalar_lea.vmem [#allocation10], 2
    %v644 = vld [vmem:[%s643] ss:$4 sm:$0x3]
    %v646 = vlaneseq
    %v647 = vshrl.u32 %v646, 7
    %v648 = vsub.s32 0, %v647
    %v649 = vrot.slane %v644, %v648
    %v650 = vlaneseq
    %v651 = vshrl.u32 %v650, 7
    %v652 = vsub.s32 1, %v651
    %v653 = vrot.slane %v644, %v652
    %v656 = vadd.f32 %v641, %v649
    %v657 = vadd.f32 %v642, %v653
    %658 = vst [vmem:[#allocation11] sm:$0xff] %v656
    %659 = vst [vmem:[#allocation11 + $0x8] sm:$0xff] %v657
    // Predicated region
    $region42: #{tpu_custom_call.1} parent=1 // pred_check
      _
    $region43: #{tpu_custom_call.1} parent=1 // pred_check_branch
      %661 = sbr.rel (0) target = $region45
    $region44: #{tpu_custom_call.1} parent=1 // pred_region
      %s663 = ssub.s32 256, 256
      %664 = vsyncadd [#allocation4], %s663
      %s666 = sshll.u32 [#allocation11], 4
      %s667 = int_to_ptr.vmem [resolvable:$true] %s666
      %669 = dma.vmem_to_hbm [thread:$0]  %s667, 256, %s5, [#allocation4]
    $region45: #{tpu_custom_call.1} parent=1 // pred_fallthru
      _
    // Predicated region
    $region46: #{tpu_custom_call.1} parent=1 // pred_check
      _
    $region47: #{tpu_custom_call.1} parent=1 // pred_check_branch
      %671 = sbr.rel (0) target = $region49
    $region48: #{tpu_custom_call.1} parent=1 // pred_region
      %672 = dma.done [#allocation4], 256
    $region49: #{tpu_custom_call.1} parent=1 // pred_fallthru
      _
    %673 = vsyncpa [#allocation3], 1
    %674 = vsyncpa [#allocation6], 1
    %675 = vsyncpa [#allocation9], 1
    %676 = vsyncpa [#allocation4], 1

</llo_original>
